<compile_context>
chip_gen: v7x
topology: tpu7x:2x2x1
jax: 0.10.0
libtpu: 0.0.40
codegen_flags: <defaults>
</compile_context>

<pallas_src>
import jax
import jax.numpy as jnp
from jax import lax
from jax.experimental import pallas as pl
from jax.experimental.pallas import tpu as pltpu


def _cdiv(a, b):
    return -(-a // b)


def _vmem_capacity_bytes():
    try:
        info = pltpu.get_tpu_info()
        cap = getattr(info, "vmem_capacity_bytes", None)
        if cap:
            return int(cap)
    except Exception:
        pass
    return 64 * 1024 * 1024  # conservative default (v7x per-TC physical VMEM)


def _kd_kernel(s_ref, t_ref, out_ref):
    """KL contribution of one [B_blk, C, Rt, 128] spatial block.

    Channels live on a leading (non-sublane/lane) axis; spatial positions fill
    the (Rt, 128) sublane/lane tile, so channel reductions are elementwise
    vreg adds on full vregs.
    """
    j = pl.program_id(1)

    s = s_ref[...].astype(jnp.float32)   # [B, C, Rt, 128]
    t = t_ref[...].astype(jnp.float32)

    eps = jnp.float32(1e-12)             # F.normalize default eps

    # ---- F.normalize(x, p=2, dim=channel):  x / max(||x||, eps) -----------
    # rsqrt(max(sumsq, eps^2)) == 1 / max(sqrt(sumsq), eps)   (EUP, no divide)
    s_n = s * lax.rsqrt(jnp.maximum(jnp.sum(s * s, axis=1, keepdims=True), eps * eps))
    t_n = t * lax.rsqrt(jnp.maximum(jnp.sum(t * t, axis=1, keepdims=True), eps * eps))

    # ---- channel-wise softmax statistics, WITHOUT max-stabilization -------
    # SAFE ONLY because of the L2 normalization above: every element of
    # s_n / t_n is in [-1, 1] (even on the eps branch, |x_c| <= ||x|| <= eps),
    # so exp() stays in [1/e, e].  Do not remove the normalize without
    # restoring the max shift.
    e_s = jnp.exp(s_n)                                   # [B, C, Rt, 128]
    e_t = jnp.exp(t_n)
    sum_s = jnp.sum(e_s, axis=1, keepdims=True)          # [B, 1, Rt, 128]
    sum_t = jnp.sum(e_t, axis=1, keepdims=True)

    # ---- folded KL per spatial column --------------------------------------
    #   sum_c p_t*(log p_t - log p_s)
    # = (sum_c e_t*(t_n - s_n)) / sum_t + log(sum_s) - log(sum_t)
    w = jnp.sum(e_t * (t_n - s_n), axis=1, keepdims=True)
    kl_cols = (w * pl.reciprocal(sum_t, approx=False)
               + jnp.log(sum_s) - jnp.log(sum_t))

    # Accumulate across the (last, "arbitrary") spatial-tile grid axis.
    @pl.when(j == 0)
    def _init():
        out_ref[...] = jnp.zeros_like(out_ref)

    out_ref[...] += jnp.broadcast_to(jnp.sum(kl_cols), out_ref.shape)


def _plan_tiling(N, C, HW, itemsize):
    """Choose (B_blk, NB, N_pad, Rt, J, R_pad, vmem_cap).

    Per-step live footprint per 128-lane spatial row (per sample):
      inputs : 2 tensors * 2 pipeline buffers * itemsize
      temps  : ~6 live f32 intermediates (s_n, t_n, e_s, e_t, diff, prod)
    """
    vmem_cap = _vmem_capacity_bytes()
    work_budget = vmem_cap // 4                      # headroom for Mosaic/output
    bytes_per_row = (2 * 2 * itemsize + 6 * 4) * C * 128

    R = _cdiv(HW, 128)

    rt_cap = max(8, (work_budget // bytes_per_row) // 8 * 8)
    if R <= rt_cap:
        Rt, J, R_pad = R, 1, R                       # full extent: always legal
    else:
        Rt = rt_cap                                  # multiple of 8
        J = _cdiv(R, Rt)
        R_pad = Rt * J

    # Fold batch items into one block only when the whole spatial extent fits
    # a single tile; keep NB >= 2 when N >= 2 so both v7x TensorCores get work.
    B_blk = 1
    if J == 1:
        per_sample = bytes_per_row * max(R_pad, 1)
        b_mem = max(1, work_budget // per_sample)
        b_par = N if N < 2 else max(1, N // 2)
        B_blk = max(1, min(b_mem, b_par))
    NB = _cdiv(N, B_blk)
    N_pad = NB * B_blk
    return B_blk, NB, N_pad, Rt, J, R_pad, vmem_cap


def _kd_sum_pallas(s3d, t3d):
    """Sum over all (n, spatial) of  p_T * (log p_T - log_softmax(S))  after
    per-location L2-normalization over channels.  Inputs are [N, C, HW]."""
    N, C, HW = s3d.shape
    itemsize = s3d.dtype.itemsize
    B_blk, NB, N_pad, Rt, J, R_pad, vmem_cap = _plan_tiling(N, C, HW, itemsize)

    HW_pad = R_pad * 128
    # Zero padding (spatial columns or batch items) contributes exactly 0 to
    # the KL sum (uniform p_S == p_T), so no masking is required.
    if HW_pad != HW or N_pad != N:
        s3d = jnp.pad(s3d, ((0, N_pad - N), (0, 0), (0, HW_pad - HW)))
        t3d = jnp.pad(t3d, ((0, N_pad - N), (0, 0), (0, HW_pad - HW)))

    # Free (contiguous) reshape: spatial axis -> (sublane rows, 128 lanes).
    s4d = s3d.reshape(N_pad, C, R_pad, 128)
    t4d = t3d.reshape(N_pad, C, R_pad, 128)

    partials = pl.pallas_call(
        _kd_kernel,
        out_shape=jax.ShapeDtypeStruct((NB, 1, 1), jnp.float32),
        grid_spec=pltpu.PrefetchScalarGridSpec(
            num_scalar_prefetch=0,
            grid=(NB, J),
            in_specs=[
                pl.BlockSpec((B_blk, C, Rt, 128), lambda nb, j: (nb, 0, j, 0)),
                pl.BlockSpec((B_blk, C, Rt, 128), lambda nb, j: (nb, 0, j, 0)),
            ],
            out_specs=pl.BlockSpec((1, 1, 1), lambda nb, j: (nb, 0, 0)),
        ),
        compiler_params=pltpu.CompilerParams(
            dimension_semantics=("parallel", "arbitrary"),
            vmem_limit_bytes=min(vmem_cap * 3 // 4, 96 * 1024 * 1024),
        ),
    )(s4d, t4d)
    return jnp.sum(partials)


def distill_kl_feature(feature_S, feature_T):
    """JAX/Pallas equivalent of DistillKL_Feature.forward.

    feature_S, feature_T: lists of [N, C, ...] arrays with matching shapes.
    Returns scalar loss = sum_i KLDiv(log_softmax(norm(S_i)), softmax(norm(T_i)),
                                      reduction='batchmean').
    Keep bf16 features in bf16 (cast happens in-kernel); do not pre-cast to
    f32 in the caller — HBM bandwidth is the binding resource on v5e.
    """
    loss = jnp.float32(0.0)
    for s, t in zip(feature_S, feature_T):
        # TODO(synk): resPoseNet.Trans_Student (channel-adapting conv) is
        # external/undefined in the reference module; this kernel requires
        # matching channel counts.
        assert s.shape == t.shape and s.shape[1] == t.shape[1], \
            "channel mismatch needs Trans_Student"
        N, C = s.shape[0], s.shape[1]
        hw = 1
        for d in s.shape[2:]:
            hw *= d
        # Free reshape (no transpose): channels stay on axis 1, spatial flattens.
        s3d = s.reshape(N, C, hw)
        t3d = t.reshape(N, C, hw)
        kl_sum = _kd_sum_pallas(s3d, t3d)
        # torch KLDivLoss(reduction='batchmean') divides by input.size(0) = N.
        loss = loss + kl_sum / jnp.float32(N)
    return loss


def _reference(feature_S, feature_T):
    """Pure-JAX reference for validation."""
    loss = jnp.float32(0.0)
    for s, t in zip(feature_S, feature_T):
        N = s.shape[0]
        eps = 1e-12
        s_n = s / jnp.maximum(jnp.linalg.norm(s, axis=1, keepdims=True), eps)
        t_n = t / jnp.maximum(jnp.linalg.norm(t, axis=1, keepdims=True), eps)
        log_s = jax.nn.log_softmax(s_n, axis=1)
        p_t = jax.nn.softmax(t_n, axis=1)
        log_t = jax.nn.log_softmax(t_n, axis=1)
        loss = loss + jnp.sum(p_t * (log_t - log_s)) / N
    return loss


if __name__ == "__main__":
    key = jax.random.PRNGKey(0)
    k1, k2, k3, k4 = jax.random.split(key, 4)

    # Two feature pairs (student/teacher with matching channel counts).
    sA = jax.random.normal(k1, (2, 4, 16, 16), dtype=jnp.float32)
    tA = jax.random.normal(k2, (2, 4, 16, 16), dtype=jnp.float32)
    sB = jax.random.normal(k3, (2, 8, 8, 8), dtype=jnp.float32)
    tB = jax.random.normal(k4, (2, 8, 8, 8), dtype=jnp.float32)

    feature_S = [sA, sB]
    feature_T = [tA, tB]

    loss = jax.block_until_ready(distill_kl_feature(feature_S, feature_T))
    ref = jax.block_until_ready(_reference(feature_S, feature_T))

    assert jnp.allclose(loss, ref, rtol=1e-4, atol=1e-4), (loss, ref)
    print("KERNEL_OK")
</pallas_src>

<mosaic_0001>
module attributes {stable_mosaic.version = 11 : i64} {
  func.func @_kd_kernel(%arg0: i32, %arg1: i32, %arg2: memref<1x4x2x128xf32, #tpu.memory_space<vmem>>, %arg3: memref<1x4x2x128xf32, #tpu.memory_space<vmem>>, %arg4: memref<1x1x1xf32, #tpu.memory_space<vmem>>) attributes {dimension_semantics = [#tpu.dimension_semantics<parallel>, #tpu.dimension_semantics<arbitrary>], iteration_bounds = array<i64: 2, 1>, scalar_prefetch = 0 : i64, scratch_operands = 0 : i64, tpu.core_type = #tpu.core_type<tc>, window_params = [{transform_indices = @transform_0, window_bounds = array<i64: 1, 4, 2, 128>}, {transform_indices = @transform_1, window_bounds = array<i64: 1, 4, 2, 128>}, {transform_indices = @transform_2, window_bounds = array<i64: 1, 1, 1>}]} {
    %c0 = arith.constant 0 : index
    %c0_0 = arith.constant 0 : index
    %c0_1 = arith.constant 0 : index
    %c0_2 = arith.constant 0 : index
    %0 = vector.load %arg2[%c0, %c0_0, %c0_1, %c0_2] : memref<1x4x2x128xf32, #tpu.memory_space<vmem>>, vector<1x4x2x128xf32>
    %c0_3 = arith.constant 0 : index
    %c0_4 = arith.constant 0 : index
    %c0_5 = arith.constant 0 : index
    %c0_6 = arith.constant 0 : index
    %1 = vector.load %arg3[%c0_3, %c0_4, %c0_5, %c0_6] : memref<1x4x2x128xf32, #tpu.memory_space<vmem>>, vector<1x4x2x128xf32>
    %2 = arith.mulf %0, %0 : vector<1x4x2x128xf32>
    %cst = arith.constant dense<0.000000e+00> : vector<1x2x128xf32>
    %3 = vector.multi_reduction <add>, %2, %cst [1] : vector<1x4x2x128xf32> to vector<1x2x128xf32>
    %4 = vector.shape_cast %3 : vector<1x2x128xf32> to vector<1x1x2x128xf32>
    %cst_7 = arith.constant 9.99999996E-13 : f32
    %cst_8 = arith.constant 9.99999996E-13 : f32
    %5 = arith.mulf %cst_7, %cst_8 : f32
    %6 = vector.broadcast %5 : f32 to vector<1x1x2x128xf32>
    %7 = arith.maximumf %4, %6 : vector<1x1x2x128xf32>
    %8 = math.rsqrt %7 : vector<1x1x2x128xf32>
    %9 = vector.broadcast %8 : vector<1x1x2x128xf32> to vector<1x4x2x128xf32>
    %10 = arith.mulf %0, %9 : vector<1x4x2x128xf32>
    %11 = arith.mulf %1, %1 : vector<1x4x2x128xf32>
    %cst_9 = arith.constant dense<0.000000e+00> : vector<1x2x128xf32>
    %12 = vector.multi_reduction <add>, %11, %cst_9 [1] : vector<1x4x2x128xf32> to vector<1x2x128xf32>
    %13 = vector.shape_cast %12 : vector<1x2x128xf32> to vector<1x1x2x128xf32>
    %cst_10 = arith.constant 9.99999996E-13 : f32
    %cst_11 = arith.constant 9.99999996E-13 : f32
    %14 = arith.mulf %cst_10, %cst_11 : f32
    %15 = vector.broadcast %14 : f32 to vector<1x1x2x128xf32>
    %16 = arith.maximumf %13, %15 : vector<1x1x2x128xf32>
    %17 = math.rsqrt %16 : vector<1x1x2x128xf32>
    %18 = vector.broadcast %17 : vector<1x1x2x128xf32> to vector<1x4x2x128xf32>
    %19 = arith.mulf %1, %18 : vector<1x4x2x128xf32>
    %20 = math.exp %10 : vector<1x4x2x128xf32>
    %21 = math.exp %19 : vector<1x4x2x128xf32>
    %cst_12 = arith.constant dense<0.000000e+00> : vector<1x2x128xf32>
    %22 = vector.multi_reduction <add>, %20, %cst_12 [1] : vector<1x4x2x128xf32> to vector<1x2x128xf32>
    %23 = vector.shape_cast %22 : vector<1x2x128xf32> to vector<1x1x2x128xf32>
    %cst_13 = arith.constant dense<0.000000e+00> : vector<1x2x128xf32>
    %24 = vector.multi_reduction <add>, %21, %cst_13 [1] : vector<1x4x2x128xf32> to vector<1x2x128xf32>
    %25 = vector.shape_cast %24 : vector<1x2x128xf32> to vector<1x1x2x128xf32>
    %26 = arith.subf %19, %10 : vector<1x4x2x128xf32>
    %27 = arith.mulf %21, %26 : vector<1x4x2x128xf32>
    %cst_14 = arith.constant dense<0.000000e+00> : vector<1x2x128xf32>
    %28 = vector.multi_reduction <add>, %27, %cst_14 [1] : vector<1x4x2x128xf32> to vector<1x2x128xf32>
    %29 = vector.shape_cast %28 : vector<1x2x128xf32> to vector<1x1x2x128xf32>
    %30 = tpu.reciprocal %25 : vector<1x1x2x128xf32> -> vector<1x1x2x128xf32>
    %31 = arith.mulf %29, %30 : vector<1x1x2x128xf32>
    %32 = math.log %23 : vector<1x1x2x128xf32>
    %33 = arith.addf %31, %32 : vector<1x1x2x128xf32>
    %34 = math.log %25 : vector<1x1x2x128xf32>
    %35 = arith.subf %33, %34 : vector<1x1x2x128xf32>
    %c0_i32 = arith.constant 0 : i32
    %36 = arith.cmpi eq, %arg1, %c0_i32 : i32
    %37 = arith.extui %36 : i1 to i32
    %c0_i32_15 = arith.constant 0 : i32
    %38 = arith.cmpi ne, %37, %c0_i32_15 : i32
    scf.if %38 {
      %cst_23 = arith.constant 0.000000e+00 : f32
      %47 = vector.broadcast %cst_23 : f32 to vector<1x1x1xf32>
      %c0_24 = arith.constant 0 : index
      %c0_25 = arith.constant 0 : index
      %c0_26 = arith.constant 0 : index
      %48 = vector.load %arg4[%c0_24, %c0_25, %c0_26] : memref<1x1x1xf32, #tpu.memory_space<vmem>>, vector<1x1x1xf32>
      tpu.vector_store %arg4[%c0_24, %c0_25, %c0_26], %47 {strides = array<i32>} : memref<1x1x1xf32, #tpu.memory_space<vmem>>, vector<1x1x1xf32>,
    } else {
    }
    %c0_16 = arith.constant 0 : index
    %c0_17 = arith.constant 0 : index
    %c0_18 = arith.constant 0 : index
    %39 = vector.load %arg4[%c0_16, %c0_17, %c0_18] : memref<1x1x1xf32, #tpu.memory_space<vmem>>, vector<1x1x1xf32>
    %40 = vector.shape_cast %35 : vector<1x1x2x128xf32> to vector<1x1x1x2x128xf32>
    %cst_19 = arith.constant dense<0.000000e+00> : vector<1xf32>
    %41 = vector.multi_reduction <add>, %40, %cst_19 [1, 2, 3, 4] : vector<1x1x1x2x128xf32> to vector<1xf32>
    %42 = vector.shape_cast %41 : vector<1xf32> to vector<1x1x1x1x1xf32>
    %43 = vector.extract %42[0, 0, 0, 0, 0] : f32 from vector<1x1x1x1x1xf32>
    %44 = vector.broadcast %43 : f32 to vector<1x1x1xf32>
    %45 = arith.addf %39, %44 : vector<1x1x1xf32>
    %c0_20 = arith.constant 0 : index
    %c0_21 = arith.constant 0 : index
    %c0_22 = arith.constant 0 : index
    %46 = vector.load %arg4[%c0_20, %c0_21, %c0_22] : memref<1x1x1xf32, #tpu.memory_space<vmem>>, vector<1x1x1xf32>
    tpu.vector_store %arg4[%c0_20, %c0_21, %c0_22], %45 {strides = array<i32>} : memref<1x1x1xf32, #tpu.memory_space<vmem>>, vector<1x1x1xf32>,
    return
  }
  func.func @transform_0(%arg0: i32, %arg1: i32) -> (i32, i32, i32, i32) {
    %c0_i32 = arith.constant 0 : i32
    %c0_i32_0 = arith.constant 0 : i32
    %c0_i32_1 = arith.constant 0 : i32
    return %arg0, %c0_i32, %arg1, %c0_i32_0 : i32, i32, i32, i32
  }
  func.func @transform_1(%arg0: i32, %arg1: i32) -> (i32, i32, i32, i32) {
    %c0_i32 = arith.constant 0 : i32
    %c0_i32_0 = arith.constant 0 : i32
    %c0_i32_1 = arith.constant 0 : i32
    return %arg0, %c0_i32, %arg1, %c0_i32_0 : i32, i32, i32, i32
  }
  func.func @transform_2(%arg0: i32, %arg1: i32) -> (i32, i32, i32) {
    %c0_i32 = arith.constant 0 : i32
    %c0_i32_0 = arith.constant 0 : i32
    %c0_i32_1 = arith.constant 0 : i32
    return %arg0, %c0_i32, %c0_i32_0 : i32, i32, i32
  }
}

</mosaic_0001>

<llo_original>
// kernel: tpu_custom_call.1
$region0: #{tpu_custom_call.1}
  #allocation0 [shape = 'u32[]', space=smem, size = 0x4, offset = 0x4, fixed_abs, tag = 'smem constant byte address 0x4 - core index']
  #allocation1 [shape = 'u32[144,128]{1,0:T(1,128)}', space=vmem, size = 0x12000, scoped, tag = 'internal scratch']
  %s0 = inlined_call_operand.hbm [shape: f32[2,4,2,128], index: 0, kind: input, shape index: {}]
  %s1 = inlined_call_operand.hbm [shape: f32[2,4,2,128], index: 1, kind: input, shape index: {}]
  %s2 = inlined_call_operand.vmem [shape: f32[2,1,1], index: 2, kind: output, shape index: {}]
  %s3 = sld [smem:[#allocation0]]
  $region53: #{tpu_custom_call.1} parent=0
    _
  %s5 = ssub.s32 1, %s3
  %s6 = scalar_select 0, %s5, %s3
  $region1: #{tpu_custom_call.1} parent=0
    #allocation2 [shape = 'u8[8192]{0}', space=vmem, size = 0x2000, scoped, tag = 'input window, operand 0']
    #allocation3 [shape = 's32[2]{0}', space=sflag, size = 0x8, scoped, tag = 'scoped memory for tpu_custom_call.1']
    #allocation4 [shape = 'u8[8192]{0}', space=vmem, size = 0x2000, scoped, tag = 'input window, operand 1']
    #allocation5 [shape = 's32[2]{0}', space=sflag, size = 0x8, scoped, tag = 'scoped memory for tpu_custom_call.1']
    %7 = vsyncpa [#allocation3], 0
    %s8 = scalar_lea.sflag [#allocation3], 1
    %9 = vsyncpa %s8, 0
    %10 = vsyncpa [#allocation5], 0
    %s11 = scalar_lea.sflag [#allocation5], 1
    %12 = vsyncpa %s11, 0
    loop: start=0, step=1, limit=4
    $region2: #{tpu_custom_call.1} parent=1 // loop_pre_header
      _
    $region3: #{tpu_custom_call.1} parent=1 // loop_header
      %s14 = sphi 0, %s18
      %p15 = scmp.ge.s32.totalorder %s14, 4
      %s21 = sphi 0, %s33
      %s22 = sphi 0, %s29
      %s23 = sphi 0, %s21
      %s24 = sphi 0, %s22
      %s25 = sphi 0, %s23
      %s26 = sphi 0, %s24
      %s38 = sphi 0, %s40
      %s41 = sphi 0, %s38
      %s42 = sphi 0, %s41
      %s58 = sphi 0, %s42
      %s66 = sphi 0, %s68
      %s69 = sphi 0, %s66
      %s70 = sphi 0, %s69
      %s86 = sphi 0, %s70
      %s92 = sphi 0, %s94
      %s95 = sphi 0, %s92
      %s96 = sphi 0, %s95
      %s112 = sphi 0, %s96
    $region4: #{tpu_custom_call.1} parent=1 // loop_header_branch
      %17 = sbr.rel (%p15) target = $region8
    $region5: #{tpu_custom_call.1} parent=1 // loop_body
      %s19 = ssub.s32 %s14, 1
      %s20 = ssub.s32 %s14, 2
      %s27 = sadd.s32 1, %s22
      %p28 = scmp.ge.s32.totalorder %s27, 1
      %s29 = scalar_select %p28, 0, %s27
      %s30 = sadd.s32 1, %s21
      %s31 = scalar_select %p28, %s30, %s21
      %p32 = scmp.ge.s32.totalorder %s31, 2
      %s33 = scalar_select %p32, 0, %s31
      %s34 = ssub.s32 %s21, %s33
      %s35 = ssub.s32 %s22, %s29
      %s36 = sor.u32 %s34, %s35
      %p37 = scmp.eq.s32.totalorder %s36, 0
      %s39 = sadd.s32 %s38, 1
      %s40 = scalar_select %p37, %s38, %s39
      %p43 = pneg %p37
      %p44 = scmp.eq.s32.totalorder %s14, 1
      %p45 = por %p43, %p44
      %p46 = scmp.ne.s32.totalorder %s38, %s41
      %p47 = scmp.eq.s32.totalorder %s14, 0
      %p48 = por %p46, %p47
      %p49 = scmp.ne.s32.totalorder %s38, %s41
      %p50 = scmp.eq.s32.totalorder %s19, 1
      %p51 = por %p49, %p50
      %p52 = scmp.ne.s32.totalorder %s41, %s42
      %p53 = scmp.eq.s32.totalorder %s19, 0
      %p54 = por %p52, %p53
      %p55 = scmp.ne.s32.totalorder %s41, %s42
      %p56 = scmp.eq.s32.totalorder %s20, 1
      %p57 = por %p55, %p56
      %p59 = scmp.ne.s32.totalorder %s42, %s58
      %p60 = scmp.eq.s32.totalorder %s20, 0
      %p61 = por %p59, %p60
      %s62 = ssub.s32 %s21, %s33
      %s63 = ssub.s32 %s22, %s29
      %s64 = sor.u32 %s62, %s63
      %p65 = scmp.eq.s32.totalorder %s64, 0
      %s67 = sadd.s32 %s66, 1
      %s68 = scalar_select %p65, %s66, %s67
      %p71 = pneg %p65
      %p72 = scmp.eq.s32.totalorder %s14, 1
      %p73 = por %p71, %p72
      %p74 = scmp.ne.s32.totalorder %s66, %s69
      %p75 = scmp.eq.s32.totalorder %s14, 0
      %p76 = por %p74, %p75
      %p77 = scmp.ne.s32.totalorder %s66, %s69
      %p78 = scmp.eq.s32.totalorder %s19, 1
      %p79 = por %p77, %p78
      %p80 = scmp.ne.s32.totalorder %s69, %s70
      %p81 = scmp.eq.s32.totalorder %s19, 0
      %p82 = por %p80, %p81
      %p83 = scmp.ne.s32.totalorder %s69, %s70
      %p84 = scmp.eq.s32.totalorder %s20, 1
      %p85 = por %p83, %p84
      %p87 = scmp.ne.s32.totalorder %s70, %s86
      %p88 = scmp.eq.s32.totalorder %s20, 0
      %p89 = por %p87, %p88
      %s90 = ssub.s32 %s21, %s33
      %p91 = scmp.eq.s32.totalorder %s90, 0
      %s93 = sadd.s32 %s92, 1
      %s94 = scalar_select %p91, %s92, %s93
      %p97 = pneg %p91
      %p98 = scmp.eq.s32.totalorder %s14, 1
      %p99 = por %p97, %p98
      %p100 = scmp.ne.s32.totalorder %s92, %s95
      %p101 = scmp.eq.s32.totalorder %s14, 0
      %p102 = por %p100, %p101
      %p103 = scmp.ne.s32.totalorder %s92, %s95
      %p104 = scmp.eq.s32.totalorder %s19, 1
      %p105 = por %p103, %p104
      %p106 = scmp.ne.s32.totalorder %s95, %s96
      %p107 = scmp.eq.s32.totalorder %s19, 0
      %p108 = por %p106, %p107
      %p109 = scmp.ne.s32.totalorder %s95, %s96
      %p110 = scmp.eq.s32.totalorder %s20, 1
      %p111 = por %p109, %p110
      %p113 = scmp.ne.s32.totalorder %s96, %s112
      %p114 = scmp.eq.s32.totalorder %s20, 0
      %p115 = por %p113, %p114
      %p116 = scmp.le.s32.totalorder 1, %s14
      %p117 = scmp.lt.s32.totalorder %s14, 3
      %p118 = pnand %p116, %p117
      %p119 = pneg %p118
      // Predicated region
      $region9: #{tpu_custom_call.1} parent=5 // pred_check
        _
      $region10: #{tpu_custom_call.1} parent=5 // pred_check_branch
        %121 = sbr.rel (%p118) target = $region12
      $region11: #{tpu_custom_call.1} parent=5 // pred_region
        %s122 = ssub.s32 %s14, 1
      $region12: #{tpu_custom_call.1} parent=5 // pred_fallthru
        _
      %p123 = scmp.lt.s32.totalorder %s14, 2
      // Predicated region
      $region13: #{tpu_custom_call.1} parent=5 // pred_check
        %p124 = pneg %p123
      $region14: #{tpu_custom_call.1} parent=5 // pred_check_branch
        %126 = sbr.rel (%p124) target = $region16
      $region15: #{tpu_custom_call.1} parent=5 // pred_region
        // Predicated region
        $region17: #{tpu_custom_call.1} parent=15 // pred_check
          %p127 = pneg %p48
        $region18: #{tpu_custom_call.1} parent=15 // pred_check_branch
          %129 = sbr.rel (%p127) target = $region20
        $region19: #{tpu_custom_call.1} parent=15 // pred_region
          %s130 = sand.u32 %s38, 1
          %s131 = scalar_lea.sflag [#allocation3], %s130
          %s132 = sand.u32 %s38, 1
          %s133 = smul.addr %s132, 8
          %s134 = scalar_lea.vmem [#allocation2], %s133
          %s136 = ssub.s32 128, 128
          %137 = vsyncadd %s131, %s136
          %s138 = smul.addr %s21, 4
          %s139 = sadd.s32 %s22, %s138
          %s140 = smul.addr %s139, 32
          %s141 = scalar_lea.hbm %s0, %s140
          %s142 = sshll.u32 %s134, 4
          %s143 = int_to_ptr.vmem [resolvable:$true] %s142
          %148 = dma.hbm_to_vmem [thread:$0]  %s141, 128, %s143, %s131, 32, 32, 2
        $region20: #{tpu_custom_call.1} parent=15 // pred_fallthru
          _
        // Predicated region
        $region21: #{tpu_custom_call.1} parent=15 // pred_check
          %p149 = pneg %p76
        $region22: #{tpu_custom_call.1} parent=15 // pred_check_branch
          %151 = sbr.rel (%p149) target = $region24
        $region23: #{tpu_custom_call.1} parent=15 // pred_region
          %s152 = sand.u32 %s66, 1
          %s153 = scalar_lea.sflag [#allocation5], %s152
          %s154 = sand.u32 %s66, 1
          %s155 = smul.addr %s154, 8
          %s156 = scalar_lea.vmem [#allocation4], %s155
          %s158 = ssub.s32 128, 128
          %159 = vsyncadd %s153, %s158
          %s160 = smul.addr %s21, 4
          %s161 = sadd.s32 %s22, %s160
          %s162 = smul.addr %s161, 32
          %s163 = scalar_lea.hbm %s1, %s162
          %s164 = sshll.u32 %s156, 4
          %s165 = int_to_ptr.vmem [resolvable:$true] %s164
          %170 = dma.hbm_to_vmem [thread:$0]  %s163, 128, %s165, %s153, 32, 32, 2
        $region24: #{tpu_custom_call.1} parent=15 // pred_fallthru
          _
      $region16: #{tpu_custom_call.1} parent=5 // pred_fallthru
        _
      %p171 = scmp.le.s32.totalorder 1, %s14
      %p172 = scmp.lt.s32.totalorder %s14, 3
      %p173 = pnand %p171, %p172
      %p174 = pneg %p173
      // Predicated region
      $region25: #{tpu_custom_call.1} parent=5 // pred_check
        _
      $region26: #{tpu_custom_call.1} parent=5 // pred_check_branch
        %176 = sbr.rel (%p173) target = $region28
      $region27: #{tpu_custom_call.1} parent=5 // pred_region
        %s177 = ssub.s32 %s14, 1
        %s178 = sand.u32 %s41, 1
        %s179 = scalar_lea.sflag [#allocation3], %s178
        %s180 = sand.u32 %s41, 1
        %s181 = smul.addr %s180, 8
        %s182 = scalar_lea.vmem [#allocation2], %s181
        // Predicated region
        $region29: #{tpu_custom_call.1} parent=27 // pred_check
          %p183 = pneg %p54
        $region30: #{tpu_custom_call.1} parent=27 // pred_check_branch
          %185 = sbr.rel (%p183) target = $region32
        $region31: #{tpu_custom_call.1} parent=27 // pred_region
          %186 = dma.done %s179, 128
        $region32: #{tpu_custom_call.1} parent=27 // pred_fallthru
          _
        %s187 = sand.u32 %s69, 1
        %s188 = scalar_lea.sflag [#allocation5], %s187
        %s189 = sand.u32 %s69, 1
        %s190 = smul.addr %s189, 8
        %s191 = scalar_lea.vmem [#allocation4], %s190
        // Predicated region
        $region33: #{tpu_custom_call.1} parent=27 // pred_check
          %p192 = pneg %p82
        $region34: #{tpu_custom_call.1} parent=27 // pred_check_branch
          %194 = sbr.rel (%p192) target = $region36
        $region35: #{tpu_custom_call.1} parent=27 // pred_region
          %195 = dma.done %s188, 128
        $region36: #{tpu_custom_call.1} parent=27 // pred_fallthru
          _
        %s196 = sand.u32 %s41, 1
        %s197 = scalar_lea.sflag [#allocation3], %s196
        %s198 = sand.u32 %s41, 1
        %s199 = smul.addr %s198, 8
        %s200 = scalar_lea.vmem [#allocation2], %s199
        %p201 = pneg %p54
        %p202 = pneg %p51
        %s203 = sand.u32 %s69, 1
        %s204 = scalar_lea.sflag [#allocation5], %s203
        %s205 = sand.u32 %s69, 1
        %s206 = smul.addr %s205, 8
        %s207 = scalar_lea.vmem [#allocation4], %s206
        %p208 = pneg %p82
        %p209 = pneg %p79
        %p210 = pneg %p108
        %p211 = pneg %p105
        %p212 = scmp.lt.s32.totalorder %s23, 1
        %s213 = scalar_select %p212, %s23, 1
        %s214 = scalar_lea.vmem %s2, %s213
        %p215 = scmp.lt.s32.totalorder %s23, 1
        %s216 = scalar_select %p215, %s23, 1
        %s217 = scalar_lea.vmem %s2, %s216
        %v218 = vld [vmem:[%s182] sm:$0x3]
        %v219 = vld [vmem:[%s182 + $0x2] sm:$0x3]
        %v220 = vld [vmem:[%s182 + $0x4] sm:$0x3]
        %v221 = vld [vmem:[%s182 + $0x6] sm:$0x3]
        %v222 = vld [vmem:[%s191] sm:$0x3]
        %v223 = vld [vmem:[%s191 + $0x2] sm:$0x3]
        %v224 = vld [vmem:[%s191 + $0x4] sm:$0x3]
        %v225 = vld [vmem:[%s191 + $0x6] sm:$0x3]
        %v226 = vmul.f32 %v218, %v218
        %v227 = vmul.f32 %v219, %v219
        %v228 = vmul.f32 %v220, %v220
        %v229 = vmul.f32 %v221, %v221
        %vm230 = vcmask 1041408
        %v231 = vsel %vm230, %v226, 0.0
        %v232 = vsel %vm230, %v227, 0.0
        %v233 = vadd.f32 %v231, %v232
        %v234 = vsel %vm230, %v228, 0.0
        %v235 = vadd.f32 %v233, %v234
        %v236 = vsel %vm230, %v229, 0.0
        %v237 = vadd.f32 %v235, %v236
        %v238 = vmax.f32 %v237, 1e-24
        %v239 = vrsqrt.pop %v238
        %v240 = vmul.f32 %v218, %v239
        %v241 = vmul.f32 %v219, %v239
        %v242 = vmul.f32 %v220, %v239
        %v243 = vmul.f32 %v221, %v239
        %v244 = vmul.f32 %v222, %v222
        %v245 = vmul.f32 %v223, %v223
        %v246 = vmul.f32 %v224, %v224
        %v247 = vmul.f32 %v225, %v225
        %v248 = vsel %vm230, %v244, 0.0
        %v249 = vsel %vm230, %v245, 0.0
        %v250 = vadd.f32 %v248, %v249
        %v251 = vsel %vm230, %v246, 0.0
        %v252 = vadd.f32 %v250, %v251
        %v253 = vsel %vm230, %v247, 0.0
        %v254 = vadd.f32 %v252, %v253
        %v255 = vmax.f32 %v254, 1e-24
        %v256 = vrsqrt.pop %v255
        %v257 = vmul.f32 %v222, %v256
        %v258 = vmul.f32 %v223, %v256
        %v259 = vmul.f32 %v224, %v256
        %v260 = vmul.f32 %v225, %v256
        %v261 = vmul.f32 %v240, 1.442695
        %v262 = vpow.pop %v261
        %v263 = vmul.f32 %v241, 1.442695
        %v264 = vpow.pop %v263
        %v265 = vmul.f32 %v242, 1.442695
        %v266 = vpow.pop %v265
        %v267 = vmul.f32 %v243, 1.442695
        %v268 = vpow.pop %v267
        %v269 = vmul.f32 %v257, 1.442695
        %v270 = vpow.pop %v269
        %v271 = vmul.f32 %v258, 1.442695
        %v272 = vpow.pop %v271
        %v273 = vmul.f32 %v259, 1.442695
        %v274 = vpow.pop %v273
        %v275 = vmul.f32 %v260, 1.442695
        %v276 = vpow.pop %v275
        %v277 = vsel %vm230, %v262, 0.0
        %v278 = vsel %vm230, %v264, 0.0
        %v279 = vadd.f32 %v277, %v278
        %v280 = vsel %vm230, %v266, 0.0
        %v281 = vadd.f32 %v279, %v280
        %v282 = vsel %vm230, %v268, 0.0
        %v283 = vadd.f32 %v281, %v282
        %v284 = vsel %vm230, %v270, 0.0
        %v285 = vsel %vm230, %v272, 0.0
        %v286 = vadd.f32 %v284, %v285
        %v287 = vsel %vm230, %v274, 0.0
        %v288 = vadd.f32 %v286, %v287
        %v289 = vsel %vm230, %v276, 0.0
        %v290 = vadd.f32 %v288, %v289
        %v291 = vsub.f32 %v257, %v240
        %v292 = vsub.f32 %v258, %v241
        %v293 = vsub.f32 %v259, %v242
        %v294 = vsub.f32 %v260, %v243
        %v295 = vmul.f32 %v270, %v291
        %v296 = vmul.f32 %v272, %v292
        %v297 = vmul.f32 %v274, %v293
        %v298 = vmul.f32 %v276, %v294
        %v299 = vsel %vm230, %v295, 0.0
        %v300 = vsel %vm230, %v296, 0.0
        %v301 = vadd.f32 %v299, %v300
        %v302 = vsel %vm230, %v297, 0.0
        %v303 = vadd.f32 %v301, %v302
        %v304 = vsel %vm230, %v298, 0.0
        %v305 = vadd.f32 %v303, %v304
        %v306 = vrcp.pop %v290
        %v307 = vmul.f32 %v305, %v306
        %v308 = vlog2.pop %v283
        %v309 = vmul.f32 %v308, 0.6931472
        %v310 = vadd.f32 %v307, %v309
        %v311 = vlog2.pop %v290
        %v312 = vmul.f32 %v311, 0.6931472
        %v313 = vsub.f32 %v310, %v312
        %p314 = scmp.eq.s32.totalorder %s24, 0
        // Predicated region
        $region37: #{tpu_custom_call.1} parent=27 // pred_check
          %p315 = pneg %p314
        $region38: #{tpu_custom_call.1} parent=27 // pred_check_branch
          %317 = sbr.rel (%p315) target = $region40
        $region39: #{tpu_custom_call.1} parent=27 // pred_region
          %vm318 = vcmask 0
          %319 = vst.msk [vmem:[%s217] sm:$0x1] %vm318, 0.0
        $region40: #{tpu_custom_call.1} parent=27 // pred_fallthru
          _
        %v320 = vld [vmem:[%s217] sm:$0x1]
        %v321 = vsel %vm230, %v313, 0.0
        %322 = vadd.xlane.f32.xlu0 %v321
        %v323 = vpop.xlane.xlu0 %322
        %v324 = vrot.slane %v323, 4
        %v325 = vadd.f32 %v323, %v324
        %v326 = vrot.slane %v325, 2
        %v327 = vadd.f32 %v325, %v326
        %v328 = vrot.slane %v327, 1
        %v329 = vadd.f32 %v327, %v328
        %s330 = vtos %v329
        %v331 = vstv %s330
        %v332 = vadd.f32 %v320, %v331
        %vm333 = vcmask 0
        %334 = vst.msk [vmem:[%s217] sm:$0x1] %vm333, %v332
        %p335 = scmp.lt.s32.totalorder %s23, 1
        %s336 = scalar_select %p335, %s23, 1
        %s337 = scalar_lea.vmem %s2, %s336
        // Predicated region
        $region41: #{tpu_custom_call.1} parent=27 // pred_check
          %p338 = pneg %p105
        $region42: #{tpu_custom_call.1} parent=27 // pred_check_branch
          %340 = sbr.rel (%p338) target = $region44
        $region43: #{tpu_custom_call.1} parent=27 // pred_region
          _
        $region44: #{tpu_custom_call.1} parent=27 // pred_fallthru
          _
      $region28: #{tpu_custom_call.1} parent=5 // pred_fallthru
        _
      %p341 = scmp.le.s32.totalorder 2, %s14
      // Predicated region
      $region45: #{tpu_custom_call.1} parent=5 // pred_check
        %p342 = pneg %p341
      $region46: #{tpu_custom_call.1} parent=5 // pred_check_branch
        %344 = sbr.rel (%p342) target = $region48
      $region47: #{tpu_custom_call.1} parent=5 // pred_region
        %s345 = ssub.s32 %s14, 2
        // Predicated region
        $region49: #{tpu_custom_call.1} parent=47 // pred_check
          %p346 = pneg %p111
        $region50: #{tpu_custom_call.1} parent=47 // pred_check_branch
          %348 = sbr.rel (%p346) target = $region52
        $region51: #{tpu_custom_call.1} parent=47 // pred_region
          %p349 = scmp.lt.s32.totalorder %s25, 1
          %s350 = scalar_select %p349, %s25, 1
          %s351 = scalar_lea.vmem %s2, %s350
        $region52: #{tpu_custom_call.1} parent=47 // pred_fallthru
          _
      $region48: #{tpu_custom_call.1} parent=5 // pred_fallthru
        _
    $region6: #{tpu_custom_call.1} parent=1 // loop_footer
      %s18 = sadd.s32 1, %s14
    $region7: #{tpu_custom_call.1} parent=1 // loop_footer_branch
      %13 = sbr.rel target = $region3
    $region8: #{tpu_custom_call.1} parent=1 // loop_exit
      _
    %352 = vsyncpa [#allocation3], 1
    %s353 = scalar_lea.sflag [#allocation3], 1
    %354 = vsyncpa %s353, 1
    %355 = vsyncpa [#allocation5], 1
    %s356 = scalar_lea.sflag [#allocation5], 1
    %357 = vsyncpa %s356, 1

</llo_original>
